<compile_context>
chip_gen: v6e
topology: v6e:2x2x1
jax: 0.10.0
libtpu: 0.0.40
codegen_flags: <defaults>
</compile_context>

<pallas_src>
import functools

import jax
import jax.numpy as jnp
from jax.experimental import pallas as pl
from jax.experimental.pallas import tpu as pltpu


def _round_up(x, m):
    return (x + m - 1) // m * m


def _pick_row_tile(H, W, Cinp, TC, itm, out_itm, vmem_budget=24 << 20, max_m=4096):
    """Largest divisor TH of H whose per-step VMEM footprint fits the budget."""
    best = 1
    for th in range(1, H + 1):
        if H % th:
            continue
        m = th * W
        fp = (2 * (th + 2) * (W + 2) * Cinp * itm     # halo window (double-buffered)
              + m * 9 * Cinp * itm                    # im2col patch scratch
              + 2 * 9 * Cinp * TC * itm               # weight tile (double-buffered)
              + 2 * m * TC * out_itm)                 # output tile (double-buffered)
        if m <= max_m and fp <= vmem_budget:
            best = th
    return best


def _conv_bn_relu_kernel(xwin_ref, w_ref, scale_ref, bias_ref, o_ref, patch_ref,
                         *, TH, W, Cinp, TC, has_relu):
    """One grid step = (batch n, row-tile h, cout-tile c).

    xwin_ref:  (TH+2, W+2, Cinp)  halo'd input row window (auto-pipelined, bf16/f32)
    w_ref:     (9*Cinp, TC)       flattened conv weights for this Cout tile
    scale_ref: (1, TC)  f32       folded BN scale = gamma / sqrt(var + eps)
    bias_ref:  (1, TC)  f32       folded BN bias  = beta - mean * scale
    o_ref:     (1, TH, W, TC)     output tile
    patch_ref: (TH*W, 9*Cinp)     VMEM scratch: im2col patch (built once per (n, h))
    """
    c = pl.program_id(2)

    # Build the im2col patch once per (n, h); reuse it for every Cout tile (c is the innermost
    # grid axis, "arbitrary", so the scratch is still valid when c > 0).
    @pl.when(c == 0)
    def _im2col():
        for kh in range(3):
            for kw in range(3):
                t = kh * 3 + kw
                patch_ref[:, t * Cinp:(t + 1) * Cinp] = (
                    xwin_ref[kh:kh + TH, kw:kw + W, :].reshape(TH * W, Cinp))

    # Single MXU matmul with K = 9*Cinp (instead of 9 matmuls with K = Cin).
    acc = jnp.dot(patch_ref[...], w_ref[...], preferred_element_type=jnp.float32)

    # f32 BN + ReLU epilogue on the lane-dense accumulator.
    out = acc * scale_ref[0] + bias_ref[0]
    if has_relu:
        out = jnp.maximum(out, 0.0)
    o_ref[...] = out.reshape(1, TH, W, TC).astype(o_ref.dtype)


def conv_block(x_nchw, conv_weight, bn_gamma, bn_beta, bn_mean, bn_var,
               *, eps=1e-5, has_relu=True, stride=1,
               compute_dtype=jnp.bfloat16, row_tile=None, cout_tile=128):
    """Pallas ConvBlock forward. x_nchw: (N, Cin, H, W), conv_weight: (Cout, Cin, 3, 3)."""
    assert stride == 1, "only stride=1 implemented"  # TODO(synk): stride > 1
    N, Cin, H, W = x_nchw.shape
    Cout = conv_weight.shape[0]

    # Channel padding: lane-dense Cout (multiple of 128), sublane-friendly Cin (multiple of 8).
    Cinp = _round_up(Cin, 8)
    Coutp = _round_up(Cout, 128)
    TC = min(cout_tile, Coutp)
    assert Coutp % TC == 0

    itm = jnp.dtype(compute_dtype).itemsize
    out_itm = jnp.dtype(x_nchw.dtype).itemsize

    TH = row_tile if row_tile is not None else _pick_row_tile(H, W, Cinp, TC, itm, out_itm)
    assert H % TH == 0, "row_tile must divide H"
    HT = H // TH
    CT = Coutp // TC

    # ---- wrapper glue (one fused XLA pass per side: transpose + pad + window-gather + cast) ----
    x_nhwc = jnp.transpose(x_nchw, (0, 2, 3, 1))
    xp = jnp.pad(x_nhwc, ((0, 0), (1, 1), (1, 1), (0, Cinp - Cin))).astype(compute_dtype)
    # Materialize per-row-tile halo windows so the kernel input is a plain (non-overlapping)
    # BlockSpec and gets automatic double-buffered prefetch.  Shape: (N*HT, TH+2, W+2, Cinp).
    row_idx = (jnp.arange(HT)[:, None] * TH + jnp.arange(TH + 2)[None, :]).reshape(-1)
    xwin = jnp.take(xp, row_idx, axis=1).reshape(N * HT, TH + 2, W + 2, Cinp)

    w_hwio = jnp.transpose(conv_weight, (2, 3, 1, 0))     # (3,3,Cin,Cout)
    w_hwio = jnp.pad(w_hwio, ((0, 0), (0, 0), (0, Cinp - Cin), (0, Coutp - Cout)))
    w2d = w_hwio.reshape(9 * Cinp, Coutp).astype(compute_dtype)

    # Folded eval-mode BatchNorm (f32 epilogue params), zero-padded on the channel axis.
    scale = (bn_gamma.astype(jnp.float32) / jnp.sqrt(bn_var.astype(jnp.float32) + eps))
    bias = bn_beta.astype(jnp.float32) - bn_mean.astype(jnp.float32) * scale
    scale = jnp.pad(scale, (0, Coutp - Cout)).reshape(1, Coutp)
    bias = jnp.pad(bias, (0, Coutp - Cout)).reshape(1, Coutp)

    kernel = functools.partial(_conv_bn_relu_kernel, TH=TH, W=W,
                               Cinp=Cinp, TC=TC, has_relu=has_relu)

    # Per-step VMEM footprint (double-buffered window/weights/outputs + patch scratch + BN params).
    tile_bytes = (2 * (TH + 2) * (W + 2) * Cinp * itm
                  + TH * W * 9 * Cinp * itm
                  + 2 * 9 * Cinp * TC * itm
                  + 2 * TH * W * TC * out_itm
                  + 4 * 2 * TC * 4)
    # Cap at 64 MiB so the same value is safe on v7x's 64 MiB VMEM.
    vmem_limit = int(min(max(tile_bytes + (8 << 20), 32 << 20), 64 << 20))

    flops = 2 * N * H * W * Coutp * 9 * Cinp
    bytes_accessed = (xwin.size * itm + w2d.size * itm
                      + N * H * W * Coutp * out_itm + 2 * Coutp * 4)

    out_nhwc = pl.pallas_call(
        kernel,
        out_shape=jax.ShapeDtypeStruct((N, H, W, Coutp), x_nchw.dtype),
        grid=(N, HT, CT),
        in_specs=[
            # Halo'd window for row tile (n, h); block index constant across the c axis so the
            # pipeline does not re-fetch it per Cout tile.
            pl.BlockSpec((None, TH + 2, W + 2, Cinp), lambda n, h, c: (n * HT + h, 0, 0, 0)),
            pl.BlockSpec((9 * Cinp, TC), lambda n, h, c: (0, c)),    # weights (Cout tile)
            pl.BlockSpec((1, TC), lambda n, h, c: (0, c)),           # BN scale
            pl.BlockSpec((1, TC), lambda n, h, c: (0, c)),           # BN bias
        ],
        out_specs=pl.BlockSpec((1, TH, W, TC), lambda n, h, c: (n, h, 0, c)),
        scratch_shapes=[
            pltpu.VMEM((TH * W, 9 * Cinp), compute_dtype),           # im2col patch
        ],
        compiler_params=pltpu.CompilerParams(
            dimension_semantics=("parallel", "parallel", "arbitrary"),
            vmem_limit_bytes=vmem_limit),
        cost_estimate=pl.CostEstimate(flops=int(flops), transcendentals=0,
                                      bytes_accessed=int(bytes_accessed)),
    )(xwin, w2d, scale, bias)

    # Drop channel padding and go back to NCHW (single fused slice + transpose pass).
    return jnp.transpose(out_nhwc[..., :Cout], (0, 3, 1, 2))


def _reference(x_nchw, conv_weight, bn_gamma, bn_beta, bn_mean, bn_var,
               *, eps=1e-5, has_relu=True):
    """Plain-JAX reference for correctness checking."""
    out = jax.lax.conv_general_dilated(
        x_nchw, conv_weight, window_strides=(1, 1), padding=((1, 1), (1, 1)),
        dimension_numbers=("NCHW", "OIHW", "NCHW"))
    scale = bn_gamma / jnp.sqrt(bn_var + eps)
    bias = bn_beta - bn_mean * scale
    out = out * scale[None, :, None, None] + bias[None, :, None, None]
    if has_relu:
        out = jnp.maximum(out, 0.0)
    return out


if __name__ == "__main__":
    # ConvBlock(cin=4, cout=8, stride=1, has_relu=True) at small deterministic shapes.
    N, Cin, H, W, Cout = 2, 4, 16, 16, 8
    key = jax.random.PRNGKey(0)
    k_x, k_w, k_g, k_b, k_m, k_v = jax.random.split(key, 6)

    x = jax.random.normal(k_x, (N, Cin, H, W), jnp.float32)
    conv_weight = jax.random.normal(k_w, (Cout, Cin, 3, 3), jnp.float32) * 0.1
    bn_gamma = 1.0 + 0.1 * jax.random.normal(k_g, (Cout,), jnp.float32)
    bn_beta = 0.1 * jax.random.normal(k_b, (Cout,), jnp.float32)
    bn_mean = 0.1 * jax.random.normal(k_m, (Cout,), jnp.float32)
    bn_var = 1.0 + 0.1 * jax.random.uniform(k_v, (Cout,), jnp.float32)

    ref = _reference(x, conv_weight, bn_gamma, bn_beta, bn_mean, bn_var, has_relu=True)

    # 1) f32 compute, 4 row tiles -> exercises the halo windows + pipeline; tight tolerance.
    out_f32 = conv_block(x, conv_weight, bn_gamma, bn_beta, bn_mean, bn_var,
                         has_relu=True, stride=1,
                         compute_dtype=jnp.float32, row_tile=4)
    out_f32 = jax.block_until_ready(out_f32)
    assert out_f32.shape == (N, Cout, H, W)
    assert jnp.allclose(out_f32, ref, atol=1e-3, rtol=1e-3), "f32 path mismatch vs reference"

    # 2) Default bf16 MXU path (auto row tile); bf16-appropriate tolerance.
    out_bf16 = jax.block_until_ready(
        conv_block(x, conv_weight, bn_gamma, bn_beta, bn_mean, bn_var,
                   has_relu=True, stride=1))
    assert out_bf16.shape == (N, Cout, H, W)
    assert jnp.allclose(out_bf16, ref, atol=3e-2, rtol=3e-2), "bf16 path mismatch vs reference"

    # 3) has_relu=False branch.
    ref_nr = _reference(x, conv_weight, bn_gamma, bn_beta, bn_mean, bn_var, has_relu=False)
    out_nr = jax.block_until_ready(
        conv_block(x, conv_weight, bn_gamma, bn_beta, bn_mean, bn_var,
                   has_relu=False, stride=1, compute_dtype=jnp.float32, row_tile=8))
    assert jnp.allclose(out_nr, ref_nr, atol=1e-3, rtol=1e-3), "no-relu path mismatch vs reference"

    print("KERNEL_OK")
</pallas_src>

<mosaic_0001>
module attributes {stable_mosaic.version = 11 : i64} {
  func.func @_conv_bn_relu_kernel(%arg0: i32, %arg1: i32, %arg2: i32, %arg3: memref<1x6x18x8xf32, #tpu.memory_space<vmem>>, %arg4: memref<72x128xf32, #tpu.memory_space<vmem>>, %arg5: memref<1x128xf32, #tpu.memory_space<vmem>>, %arg6: memref<1x128xf32, #tpu.memory_space<vmem>>, %arg7: memref<1x4x16x128xf32, #tpu.memory_space<vmem>>, %arg8: memref<64x72xf32, #tpu.memory_space<vmem>>) attributes {dimension_semantics = [#tpu.dimension_semantics<parallel>, #tpu.dimension_semantics<parallel>, #tpu.dimension_semantics<arbitrary>], iteration_bounds = array<i64: 2, 4, 1>, scalar_prefetch = 0 : i64, scratch_operands = 1 : i64, tpu.core_type = #tpu.core_type<tc>, window_params = [{transform_indices = @transform_0, window_bounds = array<i64: 1, 6, 18, 8>}, {transform_indices = @transform_1, window_bounds = array<i64: 72, 128>}, {transform_indices = @transform_2, window_bounds = array<i64: 1, 128>}, {transform_indices = @transform_3, window_bounds = array<i64: 1, 128>}, {transform_indices = @transform_4, window_bounds = array<i64: 1, 4, 16, 128>}]} {
    %c0_i32 = arith.constant 0 : i32
    %0 = arith.cmpi eq, %arg2, %c0_i32 : i32
    %1 = arith.extui %0 : i1 to i32
    %c0_i32_0 = arith.constant 0 : i32
    %2 = arith.cmpi ne, %1, %c0_i32_0 : i32
    scf.if %2 {
      %c0_13 = arith.constant 0 : index
      %c0_14 = arith.constant 0 : index
      %c0_15 = arith.constant 0 : index
      %c0_16 = arith.constant 0 : index
      %20 = vector.load %arg3[%c0_13, %c0_14, %c0_15, %c0_16] : memref<1x6x18x8xf32, #tpu.memory_space<vmem>>, vector<1x4x16x8xf32>
      %21 = vector.shape_cast %20 : vector<1x4x16x8xf32> to vector<4x16x8xf32>
      %22 = vector.shape_cast %21 : vector<4x16x8xf32> to vector<64x8xf32>
      %c0_17 = arith.constant 0 : index
      %c0_18 = arith.constant 0 : index
      %23 = vector.load %arg8[%c0_17, %c0_18] : memref<64x72xf32, #tpu.memory_space<vmem>>, vector<64x8xf32>
      tpu.vector_store %arg8[%c0_17, %c0_18], %22 {strides = array<i32>} : memref<64x72xf32, #tpu.memory_space<vmem>>, vector<64x8xf32>,
      %c0_19 = arith.constant 0 : index
      %c0_20 = arith.constant 0 : index
      %c1 = arith.constant 1 : index
      %c0_21 = arith.constant 0 : index
      %24 = vector.load %arg3[%c0_19, %c0_20, %c1, %c0_21] : memref<1x6x18x8xf32, #tpu.memory_space<vmem>>, vector<1x4x16x8xf32>
      %25 = vector.shape_cast %24 : vector<1x4x16x8xf32> to vector<4x16x8xf32>
      %26 = vector.shape_cast %25 : vector<4x16x8xf32> to vector<64x8xf32>
      %c0_22 = arith.constant 0 : index
      %c8 = arith.constant 8 : index
      %27 = vector.load %arg8[%c0_22, %c8] : memref<64x72xf32, #tpu.memory_space<vmem>>, vector<64x8xf32>
      tpu.vector_store %arg8[%c0_22, %c8], %26 {strides = array<i32>} : memref<64x72xf32, #tpu.memory_space<vmem>>, vector<64x8xf32>,
      %c0_23 = arith.constant 0 : index
      %c0_24 = arith.constant 0 : index
      %c2 = arith.constant 2 : index
      %c0_25 = arith.constant 0 : index
      %28 = vector.load %arg3[%c0_23, %c0_24, %c2, %c0_25] : memref<1x6x18x8xf32, #tpu.memory_space<vmem>>, vector<1x4x16x8xf32>
      %29 = vector.shape_cast %28 : vector<1x4x16x8xf32> to vector<4x16x8xf32>
      %30 = vector.shape_cast %29 : vector<4x16x8xf32> to vector<64x8xf32>
      %c0_26 = arith.constant 0 : index
      %c16 = arith.constant 16 : index
      %31 = vector.load %arg8[%c0_26, %c16] : memref<64x72xf32, #tpu.memory_space<vmem>>, vector<64x8xf32>
      tpu.vector_store %arg8[%c0_26, %c16], %30 {strides = array<i32>} : memref<64x72xf32, #tpu.memory_space<vmem>>, vector<64x8xf32>,
      %c0_27 = arith.constant 0 : index
      %c1_28 = arith.constant 1 : index
      %c0_29 = arith.constant 0 : index
      %c0_30 = arith.constant 0 : index
      %32 = vector.load %arg3[%c0_27, %c1_28, %c0_29, %c0_30] : memref<1x6x18x8xf32, #tpu.memory_space<vmem>>, vector<1x4x16x8xf32>
      %33 = vector.shape_cast %32 : vector<1x4x16x8xf32> to vector<4x16x8xf32>
      %34 = vector.shape_cast %33 : vector<4x16x8xf32> to vector<64x8xf32>
      %c0_31 = arith.constant 0 : index
      %c24 = arith.constant 24 : index
      %35 = vector.load %arg8[%c0_31, %c24] : memref<64x72xf32, #tpu.memory_space<vmem>>, vector<64x8xf32>
      tpu.vector_store %arg8[%c0_31, %c24], %34 {strides = array<i32>} : memref<64x72xf32, #tpu.memory_space<vmem>>, vector<64x8xf32>,
      %c0_32 = arith.constant 0 : index
      %c1_33 = arith.constant 1 : index
      %c1_34 = arith.constant 1 : index
      %c0_35 = arith.constant 0 : index
      %36 = vector.load %arg3[%c0_32, %c1_33, %c1_34, %c0_35] : memref<1x6x18x8xf32, #tpu.memory_space<vmem>>, vector<1x4x16x8xf32>
      %37 = vector.shape_cast %36 : vector<1x4x16x8xf32> to vector<4x16x8xf32>
      %38 = vector.shape_cast %37 : vector<4x16x8xf32> to vector<64x8xf32>
      %c0_36 = arith.constant 0 : index
      %c32 = arith.constant 32 : index
      %39 = vector.load %arg8[%c0_36, %c32] : memref<64x72xf32, #tpu.memory_space<vmem>>, vector<64x8xf32>
      tpu.vector_store %arg8[%c0_36, %c32], %38 {strides = array<i32>} : memref<64x72xf32, #tpu.memory_space<vmem>>, vector<64x8xf32>,
      %c0_37 = arith.constant 0 : index
      %c1_38 = arith.constant 1 : index
      %c2_39 = arith.constant 2 : index
      %c0_40 = arith.constant 0 : index
      %40 = vector.load %arg3[%c0_37, %c1_38, %c2_39, %c0_40] : memref<1x6x18x8xf32, #tpu.memory_space<vmem>>, vector<1x4x16x8xf32>
      %41 = vector.shape_cast %40 : vector<1x4x16x8xf32> to vector<4x16x8xf32>
      %42 = vector.shape_cast %41 : vector<4x16x8xf32> to vector<64x8xf32>
      %c0_41 = arith.constant 0 : index
      %c40 = arith.constant 40 : index
      %43 = vector.load %arg8[%c0_41, %c40] : memref<64x72xf32, #tpu.memory_space<vmem>>, vector<64x8xf32>
      tpu.vector_store %arg8[%c0_41, %c40], %42 {strides = array<i32>} : memref<64x72xf32, #tpu.memory_space<vmem>>, vector<64x8xf32>,
      %c0_42 = arith.constant 0 : index
      %c2_43 = arith.constant 2 : index
      %c0_44 = arith.constant 0 : index
      %c0_45 = arith.constant 0 : index
      %44 = vector.load %arg3[%c0_42, %c2_43, %c0_44, %c0_45] : memref<1x6x18x8xf32, #tpu.memory_space<vmem>>, vector<1x4x16x8xf32>
      %45 = vector.shape_cast %44 : vector<1x4x16x8xf32> to vector<4x16x8xf32>
      %46 = vector.shape_cast %45 : vector<4x16x8xf32> to vector<64x8xf32>
      %c0_46 = arith.constant 0 : index
      %c48 = arith.constant 48 : index
      %47 = vector.load %arg8[%c0_46, %c48] : memref<64x72xf32, #tpu.memory_space<vmem>>, vector<64x8xf32>
      tpu.vector_store %arg8[%c0_46, %c48], %46 {strides = array<i32>} : memref<64x72xf32, #tpu.memory_space<vmem>>, vector<64x8xf32>,
      %c0_47 = arith.constant 0 : index
      %c2_48 = arith.constant 2 : index
      %c1_49 = arith.constant 1 : index
      %c0_50 = arith.constant 0 : index
      %48 = vector.load %arg3[%c0_47, %c2_48, %c1_49, %c0_50] : memref<1x6x18x8xf32, #tpu.memory_space<vmem>>, vector<1x4x16x8xf32>
      %49 = vector.shape_cast %48 : vector<1x4x16x8xf32> to vector<4x16x8xf32>
      %50 = vector.shape_cast %49 : vector<4x16x8xf32> to vector<64x8xf32>
      %c0_51 = arith.constant 0 : index
      %c56 = arith.constant 56 : index
      %51 = vector.load %arg8[%c0_51, %c56] : memref<64x72xf32, #tpu.memory_space<vmem>>, vector<64x8xf32>
      tpu.vector_store %arg8[%c0_51, %c56], %50 {strides = array<i32>} : memref<64x72xf32, #tpu.memory_space<vmem>>, vector<64x8xf32>,
      %c0_52 = arith.constant 0 : index
      %c2_53 = arith.constant 2 : index
      %c2_54 = arith.constant 2 : index
      %c0_55 = arith.constant 0 : index
      %52 = vector.load %arg3[%c0_52, %c2_53, %c2_54, %c0_55] : memref<1x6x18x8xf32, #tpu.memory_space<vmem>>, vector<1x4x16x8xf32>
      %53 = vector.shape_cast %52 : vector<1x4x16x8xf32> to vector<4x16x8xf32>
      %54 = vector.shape_cast %53 : vector<4x16x8xf32> to vector<64x8xf32>
      %c0_56 = arith.constant 0 : index
      %c64 = arith.constant 64 : index
      %55 = vector.load %arg8[%c0_56, %c64] : memref<64x72xf32, #tpu.memory_space<vmem>>, vector<64x8xf32>
      tpu.vector_store %arg8[%c0_56, %c64], %54 {strides = array<i32>} : memref<64x72xf32, #tpu.memory_space<vmem>>, vector<64x8xf32>,
    } else {
    }
    %c0 = arith.constant 0 : index
    %c0_1 = arith.constant 0 : index
    %3 = vector.load %arg8[%c0, %c0_1] : memref<64x72xf32, #tpu.memory_space<vmem>>, vector<64x72xf32>
    %c0_2 = arith.constant 0 : index
    %c0_3 = arith.constant 0 : index
    %4 = vector.load %arg4[%c0_2, %c0_3] : memref<72x128xf32, #tpu.memory_space<vmem>>, vector<72x128xf32>
    %cst = arith.constant dense<0.000000e+00> : vector<64x128xf32>
    %5 = tpu.matmul %3, %4, %cst {dimension_numbers = #tpu.dot_dimension_numbers<[1], [0], [0], [1], [0, 0, 1, 1], [], []>} : vector<64x72xf32>, vector<72x128xf32>, vector<64x128xf32> -> vector<64x128xf32>
    %c0_4 = arith.constant 0 : index
    %c0_5 = arith.constant 0 : index
    %6 = vector.load %arg5[%c0_4, %c0_5] : memref<1x128xf32, #tpu.memory_space<vmem>>, vector<1x128xf32>
    %7 = vector.shape_cast %6 : vector<1x128xf32> to vector<128xf32>
    %8 = vector.shape_cast %7 : vector<128xf32> to vector<1x128xf32>
    %9 = vector.broadcast %8 : vector<1x128xf32> to vector<64x128xf32>
    %10 = arith.mulf %5, %9 : vector<64x128xf32>
    %c0_6 = arith.constant 0 : index
    %c0_7 = arith.constant 0 : index
    %11 = vector.load %arg6[%c0_6, %c0_7] : memref<1x128xf32, #tpu.memory_space<vmem>>, vector<1x128xf32>
    %12 = vector.shape_cast %11 : vector<1x128xf32> to vector<128xf32>
    %13 = vector.shape_cast %12 : vector<128xf32> to vector<1x128xf32>
    %14 = vector.broadcast %13 : vector<1x128xf32> to vector<64x128xf32>
    %15 = arith.addf %10, %14 : vector<64x128xf32>
    %cst_8 = arith.constant 0.000000e+00 : f32
    %16 = vector.broadcast %cst_8 : f32 to vector<64x128xf32>
    %17 = arith.maximumf %15, %16 : vector<64x128xf32>
    %18 = vector.shape_cast %17 : vector<64x128xf32> to vector<1x4x16x128xf32>
    %c0_9 = arith.constant 0 : index
    %c0_10 = arith.constant 0 : index
    %c0_11 = arith.constant 0 : index
    %c0_12 = arith.constant 0 : index
    %19 = vector.load %arg7[%c0_9, %c0_10, %c0_11, %c0_12] : memref<1x4x16x128xf32, #tpu.memory_space<vmem>>, vector<1x4x16x128xf32>
    tpu.vector_store %arg7[%c0_9, %c0_10, %c0_11, %c0_12], %18 {strides = array<i32>} : memref<1x4x16x128xf32, #tpu.memory_space<vmem>>, vector<1x4x16x128xf32>,
    return
  }
  func.func @transform_0(%arg0: i32, %arg1: i32, %arg2: i32) -> (i32, i32, i32, i32) {
    %c4_i32 = arith.constant 4 : i32
    %0 = arith.muli %arg0, %c4_i32 : i32
    %1 = arith.addi %0, %arg1 : i32
    %c0_i32 = arith.constant 0 : i32
    %c0_i32_0 = arith.constant 0 : i32
    %c0_i32_1 = arith.constant 0 : i32
    %c0_i32_2 = arith.constant 0 : i32
    return %1, %c0_i32, %c0_i32_0, %c0_i32_1 : i32, i32, i32, i32
  }
  func.func @transform_1(%arg0: i32, %arg1: i32, %arg2: i32) -> (i32, i32) {
    %c0_i32 = arith.constant 0 : i32
    %c0_i32_0 = arith.constant 0 : i32
    return %c0_i32, %arg2 : i32, i32
  }
  func.func @transform_2(%arg0: i32, %arg1: i32, %arg2: i32) -> (i32, i32) {
    %c0_i32 = arith.constant 0 : i32
    %c0_i32_0 = arith.constant 0 : i32
    return %c0_i32, %arg2 : i32, i32
  }
  func.func @transform_3(%arg0: i32, %arg1: i32, %arg2: i32) -> (i32, i32) {
    %c0_i32 = arith.constant 0 : i32
    %c0_i32_0 = arith.constant 0 : i32
    return %c0_i32, %arg2 : i32, i32
  }
  func.func @transform_4(%arg0: i32, %arg1: i32, %arg2: i32) -> (i32, i32, i32, i32) {
    %c0_i32 = arith.constant 0 : i32
    %c0_i32_0 = arith.constant 0 : i32
    return %arg0, %arg1, %c0_i32, %arg2 : i32, i32, i32, i32
  }
}

</mosaic_0001>

<llo_original>
// kernel: tpu_custom_call.1
$region0: #{tpu_custom_call.1}
  #allocation0 [shape = 'u32[]', space=smem, size = 0x4, offset = 0x4, fixed_abs, tag = 'smem constant byte address 0x4 - core index']
  #allocation1 [shape = 'u32[144,128]{1,0:T(1,128)}', space=vmem, size = 0x12000, scoped, tag = 'internal scratch']
  #allocation2 [shape = 'f32[64,72]{1,0:T(8,128)}', space=vmem, size = 0x8000, scoped, tag = 'scratch operand']
  %s0 = inlined_call_operand.vmem [shape: f32[8,6,18,8], index: 0, kind: input, shape index: {}]
  %s1 = inlined_call_operand.vmem [shape: f32[72,128], index: 1, kind: input, shape index: {}]
  %s2 = inlined_call_operand.vmem [shape: f32[1,128], index: 2, kind: input, shape index: {}]
  %s3 = inlined_call_operand.vmem [shape: f32[1,128], index: 3, kind: input, shape index: {}]
  %s4 = inlined_call_operand.hbm [shape: f32[2,16,16,128], index: 4, kind: output, shape index: {}]
  %s5 = sld [smem:[#allocation0]]
  $region53: #{tpu_custom_call.1} parent=0
    _
  %s7 = ssub.s32 1, %s5
  %s8 = scalar_select 0, %s7, %s5
  $region1: #{tpu_custom_call.1} parent=0
    #allocation3 [shape = 'u8[65536]{0}', space=vmem, size = 0x10000, scoped, tag = 'output window, operand 0']
    #allocation4 [shape = 's32[2]{0}', space=sflag, size = 0x8, scoped, tag = 'scoped memory for tpu_custom_call.1']
    %9 = vsyncpa [#allocation4], 0
    %s10 = scalar_lea.sflag [#allocation4], 1
    %11 = vsyncpa %s10, 0
    loop: start=0, step=1, limit=10
    $region2: #{tpu_custom_call.1} parent=1 // loop_pre_header
      _
    $region3: #{tpu_custom_call.1} parent=1 // loop_header
      %s13 = sphi 0, %s17
      %p14 = scmp.ge.s32.totalorder %s13, 10
      %s20 = sphi 0, %s39
      %s21 = sphi 0, %s35
      %s22 = sphi 0, %s31
      %s23 = sphi 0, %s20
      %s24 = sphi 0, %s21
      %s25 = sphi 0, %s22
      %s26 = sphi 0, %s23
      %s27 = sphi 0, %s24
      %s28 = sphi 0, %s25
      %s46 = sphi 0, %s48
      %s49 = sphi 0, %s46
      %s50 = sphi 0, %s49
      %s66 = sphi 0, %s50
      %s72 = sphi 0, %s74
      %s75 = sphi 0, %s72
      %s76 = sphi 0, %s75
      %s92 = sphi 0, %s76
      %s98 = sphi 0, %s100
      %s101 = sphi 0, %s98
      %s102 = sphi 0, %s101
      %s118 = sphi 0, %s102
      %s124 = sphi 0, %s126
      %s127 = sphi 0, %s124
      %s128 = sphi 0, %s127
      %s144 = sphi 0, %s128
      %s154 = sphi 0, %s156
      %s157 = sphi 0, %s154
      %s158 = sphi 0, %s157
      %s174 = sphi 0, %s158
    $region4: #{tpu_custom_call.1} parent=1 // loop_header_branch
      %16 = sbr.rel (%p14) target = $region8
    $region5: #{tpu_custom_call.1} parent=1 // loop_body
      %s18 = ssub.s32 %s13, 1
      %s19 = ssub.s32 %s13, 2
      %s29 = sadd.s32 1, %s22
      %p30 = scmp.ge.s32.totalorder %s29, 1
      %s31 = scalar_select %p30, 0, %s29
      %s32 = sadd.s32 1, %s21
      %s33 = scalar_select %p30, %s32, %s21
      %p34 = scmp.ge.s32.totalorder %s33, 4
      %s35 = scalar_select %p34, 0, %s33
      %s36 = sadd.s32 1, %s20
      %s37 = scalar_select %p34, %s36, %s20
      %p38 = scmp.ge.s32.totalorder %s37, 2
      %s39 = scalar_select %p38, 0, %s37
      %s40 = smul.u32 %s20, 4
      %s41 = sadd.s32 %s40, %s21
      %s42 = smul.u32 %s39, 4
      %s43 = sadd.s32 %s42, %s35
      %s44 = ssub.s32 %s41, %s43
      %p45 = scmp.eq.s32.totalorder %s44, 0
      %s47 = sadd.s32 %s46, 1
      %s48 = scalar_select %p45, %s46, %s47
      %p51 = pneg %p45
      %p52 = scmp.eq.s32.totalorder %s13, 7
      %p53 = por %p51, %p52
      %p54 = scmp.ne.s32.totalorder %s46, %s49
      %p55 = scmp.eq.s32.totalorder %s13, 0
      %p56 = por %p54, %p55
      %p57 = scmp.ne.s32.totalorder %s46, %s49
      %p58 = scmp.eq.s32.totalorder %s18, 7
      %p59 = por %p57, %p58
      %p60 = scmp.ne.s32.totalorder %s49, %s50
      %p61 = scmp.eq.s32.totalorder %s18, 0
      %p62 = por %p60, %p61
      %p63 = scmp.ne.s32.totalorder %s49, %s50
      %p64 = scmp.eq.s32.totalorder %s19, 7
      %p65 = por %p63, %p64
      %p67 = scmp.ne.s32.totalorder %s50, %s66
      %p68 = scmp.eq.s32.totalorder %s19, 0
      %p69 = por %p67, %p68
      %s70 = ssub.s32 %s22, %s31
      %p71 = scmp.eq.s32.totalorder %s70, 0
      %s73 = sadd.s32 %s72, 1
      %s74 = scalar_select %p71, %s72, %s73
      %p77 = pneg %p71
      %p78 = scmp.eq.s32.totalorder %s13, 7
      %p79 = por %p77, %p78
      %p80 = scmp.ne.s32.totalorder %s72, %s75
      %p81 = scmp.eq.s32.totalorder %s13, 0
      %p82 = por %p80, %p81
      %p83 = scmp.ne.s32.totalorder %s72, %s75
      %p84 = scmp.eq.s32.totalorder %s18, 7
      %p85 = por %p83, %p84
      %p86 = scmp.ne.s32.totalorder %s75, %s76
      %p87 = scmp.eq.s32.totalorder %s18, 0
      %p88 = por %p86, %p87
      %p89 = scmp.ne.s32.totalorder %s75, %s76
      %p90 = scmp.eq.s32.totalorder %s19, 7
      %p91 = por %p89, %p90
      %p93 = scmp.ne.s32.totalorder %s76, %s92
      %p94 = scmp.eq.s32.totalorder %s19, 0
      %p95 = por %p93, %p94
      %s96 = ssub.s32 %s22, %s31
      %p97 = scmp.eq.s32.totalorder %s96, 0
      %s99 = sadd.s32 %s98, 1
      %s100 = scalar_select %p97, %s98, %s99
      %p103 = pneg %p97
      %p104 = scmp.eq.s32.totalorder %s13, 7
      %p105 = por %p103, %p104
      %p106 = scmp.ne.s32.totalorder %s98, %s101
      %p107 = scmp.eq.s32.totalorder %s13, 0
      %p108 = por %p106, %p107
      %p109 = scmp.ne.s32.totalorder %s98, %s101
      %p110 = scmp.eq.s32.totalorder %s18, 7
      %p111 = por %p109, %p110
      %p112 = scmp.ne.s32.totalorder %s101, %s102
      %p113 = scmp.eq.s32.totalorder %s18, 0
      %p114 = por %p112, %p113
      %p115 = scmp.ne.s32.totalorder %s101, %s102
      %p116 = scmp.eq.s32.totalorder %s19, 7
      %p117 = por %p115, %p116
      %p119 = scmp.ne.s32.totalorder %s102, %s118
      %p120 = scmp.eq.s32.totalorder %s19, 0
      %p121 = por %p119, %p120
      %s122 = ssub.s32 %s22, %s31
      %p123 = scmp.eq.s32.totalorder %s122, 0
      %s125 = sadd.s32 %s124, 1
      %s126 = scalar_select %p123, %s124, %s125
      %p129 = pneg %p123
      %p130 = scmp.eq.s32.totalorder %s13, 7
      %p131 = por %p129, %p130
      %p132 = scmp.ne.s32.totalorder %s124, %s127
      %p133 = scmp.eq.s32.totalorder %s13, 0
      %p134 = por %p132, %p133
      %p135 = scmp.ne.s32.totalorder %s124, %s127
      %p136 = scmp.eq.s32.totalorder %s18, 7
      %p137 = por %p135, %p136
      %p138 = scmp.ne.s32.totalorder %s127, %s128
      %p139 = scmp.eq.s32.totalorder %s18, 0
      %p140 = por %p138, %p139
      %p141 = scmp.ne.s32.totalorder %s127, %s128
      %p142 = scmp.eq.s32.totalorder %s19, 7
      %p143 = por %p141, %p142
      %p145 = scmp.ne.s32.totalorder %s128, %s144
      %p146 = scmp.eq.s32.totalorder %s19, 0
      %p147 = por %p145, %p146
      %s148 = ssub.s32 %s20, %s39
      %s149 = ssub.s32 %s21, %s35
      %s150 = sor.u32 %s148, %s149
      %s151 = ssub.s32 %s22, %s31
      %s152 = sor.u32 %s150, %s151
      %p153 = scmp.eq.s32.totalorder %s152, 0
      %s155 = sadd.s32 %s154, 1
      %s156 = scalar_select %p153, %s154, %s155
      %p159 = pneg %p153
      %p160 = scmp.eq.s32.totalorder %s13, 7
      %p161 = por %p159, %p160
      %p162 = scmp.ne.s32.totalorder %s154, %s157
      %p163 = scmp.eq.s32.totalorder %s13, 0
      %p164 = por %p162, %p163
      %p165 = scmp.ne.s32.totalorder %s154, %s157
      %p166 = scmp.eq.s32.totalorder %s18, 7
      %p167 = por %p165, %p166
      %p168 = scmp.ne.s32.totalorder %s157, %s158
      %p169 = scmp.eq.s32.totalorder %s18, 0
      %p170 = por %p168, %p169
      %p171 = scmp.ne.s32.totalorder %s157, %s158
      %p172 = scmp.eq.s32.totalorder %s19, 7
      %p173 = por %p171, %p172
      %p175 = scmp.ne.s32.totalorder %s158, %s174
      %p176 = scmp.eq.s32.totalorder %s19, 0
      %p177 = por %p175, %p176
      %p178 = scmp.le.s32.totalorder 1, %s13
      %p179 = scmp.lt.s32.totalorder %s13, 9
      %p180 = pnand %p178, %p179
      %p181 = pneg %p180
      // Predicated region
      $region9: #{tpu_custom_call.1} parent=5 // pred_check
        _
      $region10: #{tpu_custom_call.1} parent=5 // pred_check_branch
        %183 = sbr.rel (%p180) target = $region12
      $region11: #{tpu_custom_call.1} parent=5 // pred_region
        %s184 = ssub.s32 %s13, 1
        // Predicated region
        $region13: #{tpu_custom_call.1} parent=11 // pred_check
          %p185 = pneg %p88
        $region14: #{tpu_custom_call.1} parent=11 // pred_check_branch
          %187 = sbr.rel (%p185) target = $region16
        $region15: #{tpu_custom_call.1} parent=11 // pred_region
          %p188 = scmp.lt.s32.totalorder %s25, 0
          %s189 = scalar_select %p188, %s25, 0
          %s190 = smul.addr %s189, 8
          %s191 = scalar_lea.vmem %s1, %s190
        $region16: #{tpu_custom_call.1} parent=11 // pred_fallthru
          _
        // Predicated region
        $region17: #{tpu_custom_call.1} parent=11 // pred_check
          %p192 = pneg %p114
        $region18: #{tpu_custom_call.1} parent=11 // pred_check_branch
          %194 = sbr.rel (%p192) target = $region20
        $region19: #{tpu_custom_call.1} parent=11 // pred_region
          %p195 = scmp.lt.s32.totalorder %s25, 0
          %s196 = scalar_select %p195, %s25, 0
          %s197 = scalar_lea.vmem %s2, %s196
        $region20: #{tpu_custom_call.1} parent=11 // pred_fallthru
          _
        // Predicated region
        $region21: #{tpu_custom_call.1} parent=11 // pred_check
          %p198 = pneg %p140
        $region22: #{tpu_custom_call.1} parent=11 // pred_check_branch
          %200 = sbr.rel (%p198) target = $region24
        $region23: #{tpu_custom_call.1} parent=11 // pred_region
          %p201 = scmp.lt.s32.totalorder %s25, 0
          %s202 = scalar_select %p201, %s25, 0
          %s203 = scalar_lea.vmem %s3, %s202
        $region24: #{tpu_custom_call.1} parent=11 // pred_fallthru
          _
      $region12: #{tpu_custom_call.1} parent=5 // pred_fallthru
        _
      %p204 = scmp.lt.s32.totalorder %s13, 8
      // Predicated region
      $region25: #{tpu_custom_call.1} parent=5 // pred_check
        %p205 = pneg %p204
      $region26: #{tpu_custom_call.1} parent=5 // pred_check_branch
        %207 = sbr.rel (%p205) target = $region28
      $region27: #{tpu_custom_call.1} parent=5 // pred_region
        // Predicated region
        $region29: #{tpu_custom_call.1} parent=27 // pred_check
          %p208 = pneg %p56
        $region30: #{tpu_custom_call.1} parent=27 // pred_check_branch
          %210 = sbr.rel (%p208) target = $region32
        $region31: #{tpu_custom_call.1} parent=27 // pred_region
          %s211 = smul.u32 %s20, 4
          %s212 = sadd.s32 %s211, %s21
          %p213 = scmp.lt.s32.totalorder %s212, 7
          %s214 = scalar_select %p213, %s212, 7
          %s215 = smul.addr %s214, 18
          %s216 = smul.addr %s215, 8
          %s217 = scalar_lea.vmem %s0, %s216
          %s218 = smul.u32 %s20, 4
          %s219 = sadd.s32 %s218, %s21
        $region32: #{tpu_custom_call.1} parent=27 // pred_fallthru
          _
      $region28: #{tpu_custom_call.1} parent=5 // pred_fallthru
        _
      %p220 = scmp.le.s32.totalorder 1, %s13
      %p221 = scmp.lt.s32.totalorder %s13, 9
      %p222 = pnand %p220, %p221
      %p223 = pneg %p222
      // Predicated region
      $region33: #{tpu_custom_call.1} parent=5 // pred_check
        _
      $region34: #{tpu_custom_call.1} parent=5 // pred_check_branch
        %225 = sbr.rel (%p222) target = $region36
      $region35: #{tpu_custom_call.1} parent=5 // pred_region
        %s226 = ssub.s32 %s13, 1
        %s227 = smul.u32 %s23, 4
        %s228 = sadd.s32 %s227, %s24
        %p229 = scmp.lt.s32.totalorder %s228, 7
        %s230 = scalar_select %p229, %s228, 7
        %s231 = smul.addr %s230, 18
        %s232 = smul.addr %s231, 8
        %s233 = scalar_lea.vmem %s0, %s232
        %p234 = pneg %p62
        %p235 = pneg %p59
        %p236 = scmp.lt.s32.totalorder %s25, 0
        %s237 = scalar_select %p236, %s25, 0
        %s238 = smul.addr %s237, 8
        %s239 = scalar_lea.vmem %s1, %s238
        %p240 = pneg %p88
        %p241 = pneg %p85
        %p242 = scmp.lt.s32.totalorder %s25, 0
        %s243 = scalar_select %p242, %s25, 0
        %s244 = scalar_lea.vmem %s2, %s243
        %p245 = pneg %p114
        %p246 = pneg %p111
        %p247 = scmp.lt.s32.totalorder %s25, 0
        %s248 = scalar_select %p247, %s25, 0
        %s249 = scalar_lea.vmem %s3, %s248
        %p250 = pneg %p140
        %p251 = pneg %p137
        %p252 = pneg %p170
        %p253 = pneg %p167
        %s254 = sand.u32 %s157, 1
        %s255 = scalar_lea.sflag [#allocation4], %s254
        %s256 = sand.u32 %s157, 1
        %s257 = smul.addr %s256, 64
        %s258 = scalar_lea.vmem [#allocation3], %s257
        %s259 = smul.u32 %s23, 4
        %s260 = sadd.s32 %s259, %s24
        %p261 = scmp.lt.s32.totalorder %s260, 7
        %s262 = scalar_select %p261, %s260, 7
        %s263 = smul.addr %s262, 18
        %s264 = smul.addr %s263, 8
        %s265 = scalar_lea.vmem %s0, %s264
        %s266 = smul.u32 %s23, 4
        %s267 = sadd.s32 %s266, %s24
        %p268 = scmp.lt.s32.totalorder %s25, 0
        %s269 = scalar_select %p268, %s25, 0
        %s270 = smul.addr %s269, 8
        %s271 = scalar_lea.vmem %s1, %s270
        %p272 = scmp.lt.s32.totalorder %s25, 0
        %s273 = scalar_select %p272, %s25, 0
        %s274 = scalar_lea.vmem %s2, %s273
        %p275 = scmp.lt.s32.totalorder %s25, 0
        %s276 = scalar_select %p275, %s25, 0
        %s277 = scalar_lea.vmem %s3, %s276
        %s278 = smul.u32 4, %s24
        %p279 = scmp.eq.s32.totalorder %s25, 0
        // Predicated region
        $region37: #{tpu_custom_call.1} parent=35 // pred_check
          %p280 = pneg %p279
        $region38: #{tpu_custom_call.1} parent=35 // pred_check_branch
          %282 = sbr.rel (%p280) target = $region40
        $region39: #{tpu_custom_call.1} parent=35 // pred_region
          %v283 = vld [vmem:[%s265] sm:$0xff]
          %v284 = vld [vmem:[%s265 + $0x8] sm:$0xff]
          %v285 = vld [vmem:[%s265 + $0x18] sm:$0xff]
          %v286 = vld [vmem:[%s265 + $0x20] sm:$0xff]
          %v287 = vld [vmem:[%s265 + $0x30] sm:$0xff]
          %v288 = vld [vmem:[%s265 + $0x38] sm:$0xff]
          %v289 = vld [vmem:[%s265 + $0x48] sm:$0xff]
          %v290 = vld [vmem:[%s265 + $0x50] sm:$0xff]
          %vm291 = vcmask 64512
          %292 = vst.msk [vmem:[#allocation2] sm:$0xff] %vm291, %v283
          %293 = vst.msk [vmem:[#allocation2 + $0x8] sm:$0xff] %vm291, %v284
          %294 = vst.msk [vmem:[#allocation2 + $0x10] sm:$0xff] %vm291, %v285
          %295 = vst.msk [vmem:[#allocation2 + $0x18] sm:$0xff] %vm291, %v286
          %296 = vst.msk [vmem:[#allocation2 + $0x20] sm:$0xff] %vm291, %v287
          %297 = vst.msk [vmem:[#allocation2 + $0x28] sm:$0xff] %vm291, %v288
          %298 = vst.msk [vmem:[#allocation2 + $0x30] sm:$0xff] %vm291, %v289
          %299 = vst.msk [vmem:[#allocation2 + $0x38] sm:$0xff] %vm291, %v290
          %v300 = vld [vmem:[%s265 + $0x1] sm:$0xff]
          %v301 = vld [vmem:[%s265 + $0x9] sm:$0xff]
          %v302 = vld [vmem:[%s265 + $0x19] sm:$0xff]
          %v303 = vld [vmem:[%s265 + $0x21] sm:$0xff]
          %v304 = vld [vmem:[%s265 + $0x31] sm:$0xff]
          %v305 = vld [vmem:[%s265 + $0x39] sm:$0xff]
          %v306 = vld [vmem:[%s265 + $0x49] sm:$0xff]
          %v307 = vld [vmem:[%s265 + $0x51] sm:$0xff]
          %316 = vrot.lane.b32.xlu0 %v300, 8
          %v317 = vpop.permute.xlu0 %316
          %318 = vrot.lane.b32.xlu0 %v301, 8
          %v319 = vpop.permute.xlu0 %318
          %320 = vrot.lane.b32.xlu0 %v302, 8
          %v321 = vpop.permute.xlu0 %320
          %322 = vrot.lane.b32.xlu0 %v303, 8
          %v323 = vpop.permute.xlu0 %322
          %324 = vrot.lane.b32.xlu0 %v304, 8
          %v325 = vpop.permute.xlu0 %324
          %326 = vrot.lane.b32.xlu0 %v305, 8
          %v327 = vpop.permute.xlu0 %326
          %328 = vrot.lane.b32.xlu0 %v306, 8
          %v329 = vpop.permute.xlu0 %328
          %330 = vrot.lane.b32.xlu0 %v307, 8
          %v331 = vpop.permute.xlu0 %330
          %vm340 = vcmask 130112
          %341 = vst.msk [vmem:[#allocation2] sm:$0xff] %vm340, %v317
          %342 = vst.msk [vmem:[#allocation2 + $0x8] sm:$0xff] %vm340, %v319
          %343 = vst.msk [vmem:[#allocation2 + $0x10] sm:$0xff] %vm340, %v321
          %344 = vst.msk [vmem:[#allocation2 + $0x18] sm:$0xff] %vm340, %v323
          %345 = vst.msk [vmem:[#allocation2 + $0x20] sm:$0xff] %vm340, %v325
          %346 = vst.msk [vmem:[#allocation2 + $0x28] sm:$0xff] %vm340, %v327
          %347 = vst.msk [vmem:[#allocation2 + $0x30] sm:$0xff] %vm340, %v329
          %348 = vst.msk [vmem:[#allocation2 + $0x38] sm:$0xff] %vm340, %v331
          %v349 = vld [vmem:[%s265 + $0x2] sm:$0xff]
          %v350 = vld [vmem:[%s265 + $0xa] sm:$0xff]
          %v351 = vld [vmem:[%s265 + $0x1a] sm:$0xff]
          %v352 = vld [vmem:[%s265 + $0x22] sm:$0xff]
          %v353 = vld [vmem:[%s265 + $0x32] sm:$0xff]
          %v354 = vld [vmem:[%s265 + $0x3a] sm:$0xff]
          %v355 = vld [vmem:[%s265 + $0x4a] sm:$0xff]
          %v356 = vld [vmem:[%s265 + $0x52] sm:$0xff]
          %365 = vrot.lane.b32.xlu0 %v349, 16
          %v366 = vpop.permute.xlu0 %365
          %367 = vrot.lane.b32.xlu0 %v350, 16
          %v368 = vpop.permute.xlu0 %367
          %369 = vrot.lane.b32.xlu0 %v351, 16
          %v370 = vpop.permute.xlu0 %369
          %371 = vrot.lane.b32.xlu0 %v352, 16
          %v372 = vpop.permute.xlu0 %371
          %373 = vrot.lane.b32.xlu0 %v353, 16
          %v374 = vpop.permute.xlu0 %373
          %375 = vrot.lane.b32.xlu0 %v354, 16
          %v376 = vpop.permute.xlu0 %375
          %377 = vrot.lane.b32.xlu0 %v355, 16
          %v378 = vpop.permute.xlu0 %377
          %379 = vrot.lane.b32.xlu0 %v356, 16
          %v380 = vpop.permute.xlu0 %379
          %vm389 = vcmask 195712
          %390 = vst.msk [vmem:[#allocation2] sm:$0xff] %vm389, %v366
          %391 = vst.msk [vmem:[#allocation2 + $0x8] sm:$0xff] %vm389, %v368
          %392 = vst.msk [vmem:[#allocation2 + $0x10] sm:$0xff] %vm389, %v370
          %393 = vst.msk [vmem:[#allocation2 + $0x18] sm:$0xff] %vm389, %v372
          %394 = vst.msk [vmem:[#allocation2 + $0x20] sm:$0xff] %vm389, %v374
          %395 = vst.msk [vmem:[#allocation2 + $0x28] sm:$0xff] %vm389, %v376
          %396 = vst.msk [vmem:[#allocation2 + $0x30] sm:$0xff] %vm389, %v378
          %397 = vst.msk [vmem:[#allocation2 + $0x38] sm:$0xff] %vm389, %v380
          %s398 = scalar_lea.vmem %s265, 24
          %v399 = vld [vmem:[%s398] sm:$0xff]
          %v400 = vld [vmem:[%s398 + $0x8] sm:$0xff]
          %v401 = vld [vmem:[%s398 + $0x18] sm:$0xff]
          %v402 = vld [vmem:[%s398 + $0x20] sm:$0xff]
          %v403 = vld [vmem:[%s398 + $0x30] sm:$0xff]
          %v404 = vld [vmem:[%s398 + $0x38] sm:$0xff]
          %v405 = vld [vmem:[%s398 + $0x48] sm:$0xff]
          %v406 = vld [vmem:[%s398 + $0x50] sm:$0xff]
          %415 = vrot.lane.b32.xlu0 %v399, 24
          %v416 = vpop.permute.xlu0 %415
          %417 = vrot.lane.b32.xlu0 %v400, 24
          %v418 = vpop.permute.xlu0 %417
          %419 = vrot.lane.b32.xlu0 %v401, 24
          %v420 = vpop.permute.xlu0 %419
          %421 = vrot.lane.b32.xlu0 %v402, 24
          %v422 = vpop.permute.xlu0 %421
          %423 = vrot.lane.b32.xlu0 %v403, 24
          %v424 = vpop.permute.xlu0 %423
          %425 = vrot.lane.b32.xlu0 %v404, 24
          %v426 = vpop.permute.xlu0 %425
          %427 = vrot.lane.b32.xlu0 %v405, 24
          %v428 = vpop.permute.xlu0 %427
          %429 = vrot.lane.b32.xlu0 %v406, 24
          %v430 = vpop.permute.xlu0 %429
          %vm439 = vcmask 261312
          %440 = vst.msk [vmem:[#allocation2] sm:$0xff] %vm439, %v416
          %441 = vst.msk [vmem:[#allocation2 + $0x8] sm:$0xff] %vm439, %v418
          %442 = vst.msk [vmem:[#allocation2 + $0x10] sm:$0xff] %vm439, %v420
          %443 = vst.msk [vmem:[#allocation2 + $0x18] sm:$0xff] %vm439, %v422
          %444 = vst.msk [vmem:[#allocation2 + $0x20] sm:$0xff] %vm439, %v424
          %445 = vst.msk [vmem:[#allocation2 + $0x28] sm:$0xff] %vm439, %v426
          %446 = vst.msk [vmem:[#allocation2 + $0x30] sm:$0xff] %vm439, %v428
          %447 = vst.msk [vmem:[#allocation2 + $0x38] sm:$0xff] %vm439, %v430
          %v448 = vld [vmem:[%s398 + $0x1] sm:$0xff]
          %v449 = vld [vmem:[%s398 + $0x9] sm:$0xff]
          %v450 = vld [vmem:[%s398 + $0x19] sm:$0xff]
          %v451 = vld [vmem:[%s398 + $0x21] sm:$0xff]
          %v452 = vld [vmem:[%s398 + $0x31] sm:$0xff]
          %v453 = vld [vmem:[%s398 + $0x39] sm:$0xff]
          %v454 = vld [vmem:[%s398 + $0x49] sm:$0xff]
          %v455 = vld [vmem:[%s398 + $0x51] sm:$0xff]
          %464 = vrot.lane.b32.xlu0 %v448, 32
          %v465 = vpop.permute.xlu0 %464
          %466 = vrot.lane.b32.xlu0 %v449, 32
          %v467 = vpop.permute.xlu0 %466
          %468 = vrot.lane.b32.xlu0 %v450, 32
          %v469 = vpop.permute.xlu0 %468
          %470 = vrot.lane.b32.xlu0 %v451, 32
          %v471 = vpop.permute.xlu0 %470
          %472 = vrot.lane.b32.xlu0 %v452, 32
          %v473 = vpop.permute.xlu0 %472
          %474 = vrot.lane.b32.xlu0 %v453, 32
          %v475 = vpop.permute.xlu0 %474
          %476 = vrot.lane.b32.xlu0 %v454, 32
          %v477 = vpop.permute.xlu0 %476
          %478 = vrot.lane.b32.xlu0 %v455, 32
          %v479 = vpop.permute.xlu0 %478
          %vm488 = vcmask 326912
          %489 = vst.msk [vmem:[#allocation2] sm:$0xff] %vm488, %v465
          %490 = vst.msk [vmem:[#allocation2 + $0x8] sm:$0xff] %vm488, %v467
          %491 = vst.msk [vmem:[#allocation2 + $0x10] sm:$0xff] %vm488, %v469
          %492 = vst.msk [vmem:[#allocation2 + $0x18] sm:$0xff] %vm488, %v471
          %493 = vst.msk [vmem:[#allocation2 + $0x20] sm:$0xff] %vm488, %v473
          %494 = vst.msk [vmem:[#allocation2 + $0x28] sm:$0xff] %vm488, %v475
          %495 = vst.msk [vmem:[#allocation2 + $0x30] sm:$0xff] %vm488, %v477
          %496 = vst.msk [vmem:[#allocation2 + $0x38] sm:$0xff] %vm488, %v479
          %v497 = vld [vmem:[%s398 + $0x2] sm:$0xff]
          %v498 = vld [vmem:[%s398 + $0xa] sm:$0xff]
          %v499 = vld [vmem:[%s398 + $0x1a] sm:$0xff]
          %v500 = vld [vmem:[%s398 + $0x22] sm:$0xff]
          %v501 = vld [vmem:[%s398 + $0x32] sm:$0xff]
          %v502 = vld [vmem:[%s398 + $0x3a] sm:$0xff]
          %v503 = vld [vmem:[%s398 + $0x4a] sm:$0xff]
          %v504 = vld [vmem:[%s398 + $0x52] sm:$0xff]
          %513 = vrot.lane.b32.xlu0 %v497, 40
          %v514 = vpop.permute.xlu0 %513
          %515 = vrot.lane.b32.xlu0 %v498, 40
          %v516 = vpop.permute.xlu0 %515
          %517 = vrot.lane.b32.xlu0 %v499, 40
          %v518 = vpop.permute.xlu0 %517
          %519 = vrot.lane.b32.xlu0 %v500, 40
          %v520 = vpop.permute.xlu0 %519
          %521 = vrot.lane.b32.xlu0 %v501, 40
          %v522 = vpop.permute.xlu0 %521
          %523 = vrot.lane.b32.xlu0 %v502, 40
          %v524 = vpop.permute.xlu0 %523
          %525 = vrot.lane.b32.xlu0 %v503, 40
          %v526 = vpop.permute.xlu0 %525
          %527 = vrot.lane.b32.xlu0 %v504, 40
          %v528 = vpop.permute.xlu0 %527
          %vm537 = vcmask 392512
          %538 = vst.msk [vmem:[#allocation2] sm:$0xff] %vm537, %v514
          %539 = vst.msk [vmem:[#allocation2 + $0x8] sm:$0xff] %vm537, %v516
          %540 = vst.msk [vmem:[#allocation2 + $0x10] sm:$0xff] %vm537, %v518
          %541 = vst.msk [vmem:[#allocation2 + $0x18] sm:$0xff] %vm537, %v520
          %542 = vst.msk [vmem:[#allocation2 + $0x20] sm:$0xff] %vm537, %v522
          %543 = vst.msk [vmem:[#allocation2 + $0x28] sm:$0xff] %vm537, %v524
          %544 = vst.msk [vmem:[#allocation2 + $0x30] sm:$0xff] %vm537, %v526
          %545 = vst.msk [vmem:[#allocation2 + $0x38] sm:$0xff] %vm537, %v528
          %s546 = scalar_lea.vmem %s265, 48
          %v547 = vld [vmem:[%s546] sm:$0xff]
          %v548 = vld [vmem:[%s546 + $0x8] sm:$0xff]
          %v549 = vld [vmem:[%s546 + $0x18] sm:$0xff]
          %v550 = vld [vmem:[%s546 + $0x20] sm:$0xff]
          %v551 = vld [vmem:[%s546 + $0x30] sm:$0xff]
          %v552 = vld [vmem:[%s546 + $0x38] sm:$0xff]
          %v553 = vld [vmem:[%s546 + $0x48] sm:$0xff]
          %v554 = vld [vmem:[%s546 + $0x50] sm:$0xff]
          %563 = vrot.lane.b32.xlu0 %v547, 48
          %v564 = vpop.permute.xlu0 %563
          %565 = vrot.lane.b32.xlu0 %v548, 48
          %v566 = vpop.permute.xlu0 %565
          %567 = vrot.lane.b32.xlu0 %v549, 48
          %v568 = vpop.permute.xlu0 %567
          %569 = vrot.lane.b32.xlu0 %v550, 48
          %v570 = vpop.permute.xlu0 %569
          %571 = vrot.lane.b32.xlu0 %v551, 48
          %v572 = vpop.permute.xlu0 %571
          %573 = vrot.lane.b32.xlu0 %v552, 48
          %v574 = vpop.permute.xlu0 %573
          %575 = vrot.lane.b32.xlu0 %v553, 48
          %v576 = vpop.permute.xlu0 %575
          %577 = vrot.lane.b32.xlu0 %v554, 48
          %v578 = vpop.permute.xlu0 %577
          %vm587 = vcmask 458112
          %588 = vst.msk [vmem:[#allocation2] sm:$0xff] %vm587, %v564
          %589 = vst.msk [vmem:[#allocation2 + $0x8] sm:$0xff] %vm587, %v566
          %590 = vst.msk [vmem:[#allocation2 + $0x10] sm:$0xff] %vm587, %v568
          %591 = vst.msk [vmem:[#allocation2 + $0x18] sm:$0xff] %vm587, %v570
          %592 = vst.msk [vmem:[#allocation2 + $0x20] sm:$0xff] %vm587, %v572
          %593 = vst.msk [vmem:[#allocation2 + $0x28] sm:$0xff] %vm587, %v574
          %594 = vst.msk [vmem:[#allocation2 + $0x30] sm:$0xff] %vm587, %v576
          %595 = vst.msk [vmem:[#allocation2 + $0x38] sm:$0xff] %vm587, %v578
          %v596 = vld [vmem:[%s546 + $0x1] sm:$0xff]
          %v597 = vld [vmem:[%s546 + $0x9] sm:$0xff]
          %v598 = vld [vmem:[%s546 + $0x19] sm:$0xff]
          %v599 = vld [vmem:[%s546 + $0x21] sm:$0xff]
          %v600 = vld [vmem:[%s546 + $0x31] sm:$0xff]
          %v601 = vld [vmem:[%s546 + $0x39] sm:$0xff]
          %v602 = vld [vmem:[%s546 + $0x49] sm:$0xff]
          %v603 = vld [vmem:[%s546 + $0x51] sm:$0xff]
          %612 = vrot.lane.b32.xlu0 %v596, 56
          %v613 = vpop.permute.xlu0 %612
          %614 = vrot.lane.b32.xlu0 %v597, 56
          %v615 = vpop.permute.xlu0 %614
          %616 = vrot.lane.b32.xlu0 %v598, 56
          %v617 = vpop.permute.xlu0 %616
          %618 = vrot.lane.b32.xlu0 %v599, 56
          %v619 = vpop.permute.xlu0 %618
          %620 = vrot.lane.b32.xlu0 %v600, 56
          %v621 = vpop.permute.xlu0 %620
          %622 = vrot.lane.b32.xlu0 %v601, 56
          %v623 = vpop.permute.xlu0 %622
          %624 = vrot.lane.b32.xlu0 %v602, 56
          %v625 = vpop.permute.xlu0 %624
          %626 = vrot.lane.b32.xlu0 %v603, 56
          %v627 = vpop.permute.xlu0 %626
          %vm636 = vcmask 523712
          %637 = vst.msk [vmem:[#allocation2] sm:$0xff] %vm636, %v613
          %638 = vst.msk [vmem:[#allocation2 + $0x8] sm:$0xff] %vm636, %v615
          %639 = vst.msk [vmem:[#allocation2 + $0x10] sm:$0xff] %vm636, %v617
          %640 = vst.msk [vmem:[#allocation2 + $0x18] sm:$0xff] %vm636, %v619
          %641 = vst.msk [vmem:[#allocation2 + $0x20] sm:$0xff] %vm636, %v621
          %642 = vst.msk [vmem:[#allocation2 + $0x28] sm:$0xff] %vm636, %v623
          %643 = vst.msk [vmem:[#allocation2 + $0x30] sm:$0xff] %vm636, %v625
          %644 = vst.msk [vmem:[#allocation2 + $0x38] sm:$0xff] %vm636, %v627
          %v645 = vld [vmem:[%s546 + $0x2] sm:$0xff]
          %v646 = vld [vmem:[%s546 + $0xa] sm:$0xff]
          %v647 = vld [vmem:[%s546 + $0x1a] sm:$0xff]
          %v648 = vld [vmem:[%s546 + $0x22] sm:$0xff]
          %v649 = vld [vmem:[%s546 + $0x32] sm:$0xff]
          %v650 = vld [vmem:[%s546 + $0x3a] sm:$0xff]
          %v651 = vld [vmem:[%s546 + $0x4a] sm:$0xff]
          %v652 = vld [vmem:[%s546 + $0x52] sm:$0xff]
          %661 = vrot.lane.b32.xlu0 %v645, 64
          %v662 = vpop.permute.xlu0 %661
          %663 = vrot.lane.b32.xlu0 %v646, 64
          %v664 = vpop.permute.xlu0 %663
          %665 = vrot.lane.b32.xlu0 %v647, 64
          %v666 = vpop.permute.xlu0 %665
          %667 = vrot.lane.b32.xlu0 %v648, 64
          %v668 = vpop.permute.xlu0 %667
          %669 = vrot.lane.b32.xlu0 %v649, 64
          %v670 = vpop.permute.xlu0 %669
          %671 = vrot.lane.b32.xlu0 %v650, 64
          %v672 = vpop.permute.xlu0 %671
          %673 = vrot.lane.b32.xlu0 %v651, 64
          %v674 = vpop.permute.xlu0 %673
          %675 = vrot.lane.b32.xlu0 %v652, 64
          %v676 = vpop.permute.xlu0 %675
          %vm685 = vcmask 589312
          %686 = vst.msk [vmem:[#allocation2] sm:$0xff] %vm685, %v662
          %687 = vst.msk [vmem:[#allocation2 + $0x8] sm:$0xff] %vm685, %v664
          %688 = vst.msk [vmem:[#allocation2 + $0x10] sm:$0xff] %vm685, %v666
          %689 = vst.msk [vmem:[#allocation2 + $0x18] sm:$0xff] %vm685, %v668
          %690 = vst.msk [vmem:[#allocation2 + $0x20] sm:$0xff] %vm685, %v670
          %691 = vst.msk [vmem:[#allocation2 + $0x28] sm:$0xff] %vm685, %v672
          %692 = vst.msk [vmem:[#allocation2 + $0x30] sm:$0xff] %vm685, %v674
          %693 = vst.msk [vmem:[#allocation2 + $0x38] sm:$0xff] %vm685, %v676
        $region40: #{tpu_custom_call.1} parent=35 // pred_fallthru
          _
        %v694 = vld [vmem:[#allocation2] sm:$0xff]
        %v695 = vld [vmem:[#allocation2 + $0x8] sm:$0xff]
        %v696 = vld [vmem:[#allocation2 + $0x10] sm:$0xff]
        %v697 = vld [vmem:[#allocation2 + $0x18] sm:$0xff]
        %v698 = vld [vmem:[#allocation2 + $0x20] sm:$0xff]
        %v699 = vld [vmem:[#allocation2 + $0x28] sm:$0xff]
        %v700 = vld [vmem:[#allocation2 + $0x30] sm:$0xff]
        %v701 = vld [vmem:[#allocation2 + $0x38] sm:$0xff]
        %v702 = vld [vmem:[%s271] sm:$0xff]
        %v703 = vld [vmem:[%s271 + $0x8] sm:$0xff]
        %v704 = vld [vmem:[%s271 + $0x10] sm:$0xff]
        %v705 = vld [vmem:[%s271 + $0x18] sm:$0xff]
        %v706 = vld [vmem:[%s271 + $0x20] sm:$0xff]
        %v707 = vld [vmem:[%s271 + $0x28] sm:$0xff]
        %v708 = vld [vmem:[%s271 + $0x30] sm:$0xff]
        %v709 = vld [vmem:[%s271 + $0x38] sm:$0xff]
        %v710 = vld [vmem:[%s271 + $0x40] sm:$0xff]
        %vm711 = vcmask 588800
        %v713 = vsel %vm711, %v694, 0
        %v716 = vsel %vm711, %v695, 0
        %v719 = vsel %vm711, %v696, 0
        %v722 = vsel %vm711, %v697, 0
        %v725 = vsel %vm711, %v698, 0
        %v728 = vsel %vm711, %v699, 0
        %v731 = vsel %vm711, %v700, 0
        %v734 = vsel %vm711, %v701, 0
        %736 = vmatprep.subr.mxu0 0.0
        %737 = vmatpush1.msra.mxu0 0.0
        %738 = vmatprep.subr.mxu0 0.0
        %739 = vmatpush1.msra.mxu0 0.0
        %740 = vmatprep.subr.mxu0 0.0
        %741 = vmatpush1.msra.mxu0 0.0
        %742 = vmatprep.subr.mxu0 0.0
        %743 = vmatpush1.msra.mxu0 0.0
        %744 = vmatprep.subr.mxu0 0.0
        %745 = vmatpush1.msra.mxu0 0.0
        %746 = vmatprep.subr.mxu0 0.0
        %747 = vmatpush1.msra.mxu0 0.0
        %748 = vmatprep.subr.mxu0 0.0
        %749 = vmatpush1.msra.mxu0 0.0
        %750 = vmatprep.subr.mxu0 0.0
        %751 = vmatpush1.msra.mxu0 %v710
        %752 = vmatprep.subr.mxu0 0.0
        %753 = vmatpush1.msra.mxu0 %v709
        %754 = vmatprep.subr.mxu0 0.0
        %755 = vmatpush1.msra.mxu0 %v708
        %756 = vmatprep.subr.mxu0 0.0
        %757 = vmatpush1.msra.mxu0 %v707
        %758 = vmatprep.subr.mxu0 0.0
        %759 = vmatpush1.msra.mxu0 %v706
        %760 = vmatprep.subr.mxu0 0.0
        %761 = vmatpush1.msra.mxu0 %v705
        %762 = vmatprep.subr.mxu0 0.0
        %763 = vmatpush1.msra.mxu0 %v704
        %764 = vmatprep.subr.mxu0 0.0
        %765 = vmatpush1.msra.mxu0 %v703
        %766 = vmatprep.subr.mxu0 0.0
        %767 = vmatpush1.msra.mxu0 %v702
        %768 = vmatprep.subr.mxu0 0.0
        %769 = vmatpush2.msra.mxu0 0.0
        %770 = vmatprep.subr.mxu0 0.0
        %771 = vmatpush2.msra.mxu0 0.0
        %772 = vmatprep.subr.mxu0 0.0
        %773 = vmatpush2.msra.mxu0 0.0
        %774 = vmatprep.subr.mxu0 0.0
        %775 = vmatpush2.msra.mxu0 0.0
        %776 = vmatprep.subr.mxu0 0.0
        %777 = vmatpush2.msra.mxu0 0.0
        %778 = vmatprep.subr.mxu0 0.0
        %779 = vmatpush2.msra.mxu0 0.0
        %780 = vmatprep.subr.mxu0 0.0
        %781 = vmatpush2.msra.mxu0 0.0
        %782 = vmatprep.subr.mxu0 0.0
        %783 = vmatpush2.msra.mxu0 0.0
        %784 = vmatprep.subr.mxu0 0.0
        %785 = vmatpush2.msra.mxu0 0.0
        %786 = vmatprep.subr.mxu0 0.0
        %787 = vmatpush2.msra.mxu0 0.0
        %788 = vmatprep.subr.mxu0 0.0
        %789 = vmatpush2.msra.mxu0 0.0
        %790 = vmatprep.subr.mxu0 0.0
        %791 = vmatpush2.msra.mxu0 0.0
        %792 = vmatprep.subr.mxu0 0.0
        %793 = vmatpush2.msra.mxu0 0.0
        %794 = vmatprep.subr.mxu0 0.0
        %795 = vmatpush2.msra.mxu0 0.0
        %796 = vmatprep.subr.mxu0 0.0
        %797 = vmatpush2.msra.mxu0 0.0
        %798 = vmatprep.subr.mxu0 0.0
        %799 = vmatpush2.msra.mxu0 0.0
        %800 = vmatprep.mubr.f32.mxu0 0.0
        %801 = vmatmul.mubr.f32.gmra.mxu0 %v713
        %v802 = vpop.f32.mrf.mxu0
        %v803 = vadd.f32 0.0, %v802
        %v804 = vpop.f32.mrf.mxu0
        %805 = vmatprep.mubr.f32.mxu0 0.0
        %806 = vmatmul.mubr.f32.gmra.mxu0 %v716
        %v807 = vpop.f32.mrf.mxu0
        %v808 = vadd.f32 0.0, %v807
        %v809 = vpop.f32.mrf.mxu0
        %810 = vmatprep.mubr.f32.mxu0 0.0
        %811 = vmatmul.mubr.f32.gmra.mxu0 %v719
        %v812 = vpop.f32.mrf.mxu0
        %v813 = vadd.f32 0.0, %v812
        %v814 = vpop.f32.mrf.mxu0
        %815 = vmatprep.mubr.f32.mxu0 0.0
        %816 = vmatmul.mubr.f32.gmra.mxu0 %v722
        %v817 = vpop.f32.mrf.mxu0
        %v818 = vadd.f32 0.0, %v817
        %v819 = vpop.f32.mrf.mxu0
        %820 = vmatprep.mubr.f32.mxu0 0.0
        %821 = vmatmul.mubr.f32.gmra.mxu0 %v725
        %v822 = vpop.f32.mrf.mxu0
        %v823 = vadd.f32 0.0, %v822
        %v824 = vpop.f32.mrf.mxu0
        %825 = vmatprep.mubr.f32.mxu0 0.0
        %826 = vmatmul.mubr.f32.gmra.mxu0 %v728
        %v827 = vpop.f32.mrf.mxu0
        %v828 = vadd.f32 0.0, %v827
        %v829 = vpop.f32.mrf.mxu0
        %830 = vmatprep.mubr.f32.mxu0 0.0
        %831 = vmatmul.mubr.f32.gmra.mxu0 %v731
        %v832 = vpop.f32.mrf.mxu0
        %v833 = vadd.f32 0.0, %v832
        %v834 = vpop.f32.mrf.mxu0
        %835 = vmatprep.mubr.f32.mxu0 0.0
        %836 = vmatmul.mubr.f32.gmra.mxu0 %v734
        %v837 = vpop.f32.mrf.mxu0
        %v838 = vadd.f32 0.0, %v837
        %v839 = vpop.f32.mrf.mxu0
        %840 = vdwg.mxu0
        %v841 = vld [vmem:[%s274] sm:$0x1]
        %v843 = vlaneseq
        %v844 = vshrl.u32 %v843, 7
        %v845 = vsub.s32 0, %v844
        %v846 = vrot.slane %v841, %v845
        %v848 = vmul.f32 %v803, %v846
        %v849 = vmul.f32 %v808, %v846
        %v850 = vmul.f32 %v813, %v846
        %v851 = vmul.f32 %v818, %v846
        %v852 = vmul.f32 %v823, %v846
        %v853 = vmul.f32 %v828, %v846
        %v854 = vmul.f32 %v833, %v846
        %v855 = vmul.f32 %v838, %v846
        %v856 = vld [vmem:[%s277] sm:$0x1]
        %v858 = vlaneseq
        %v859 = vshrl.u32 %v858, 7
        %v860 = vsub.s32 0, %v859
        %v861 = vrot.slane %v856, %v860
        %v863 = vadd.f32 %v848, %v861
        %v864 = vadd.f32 %v849, %v861
        %v865 = vadd.f32 %v850, %v861
        %v866 = vadd.f32 %v851, %v861
        %v867 = vadd.f32 %v852, %v861
        %v868 = vadd.f32 %v853, %v861
        %v869 = vadd.f32 %v854, %v861
        %v870 = vadd.f32 %v855, %v861
        %v871 = vmax.f32 %v863, 0.0
        %v872 = vmax.f32 %v864, 0.0
        %v873 = vmax.f32 %v865, 0.0
        %v874 = vmax.f32 %v866, 0.0
        %v875 = vmax.f32 %v867, 0.0
        %v876 = vmax.f32 %v868, 0.0
        %v877 = vmax.f32 %v869, 0.0
        %v878 = vmax.f32 %v870, 0.0
        %879 = vst [vmem:[%s258] sm:$0xff] %v871
        %880 = vst [vmem:[%s258 + $0x8] sm:$0xff] %v872
        %881 = vst [vmem:[%s258 + $0x10] sm:$0xff] %v873
        %882 = vst [vmem:[%s258 + $0x18] sm:$0xff] %v874
        %883 = vst [vmem:[%s258 + $0x20] sm:$0xff] %v875
        %884 = vst [vmem:[%s258 + $0x28] sm:$0xff] %v876
        %885 = vst [vmem:[%s258 + $0x30] sm:$0xff] %v877
        %886 = vst [vmem:[%s258 + $0x38] sm:$0xff] %v878
        %s887 = sand.u32 %s157, 1
        %s888 = scalar_lea.sflag [#allocation4], %s887
        %s889 = sand.u32 %s157, 1
        %s890 = smul.addr %s889, 64
        %s891 = scalar_lea.vmem [#allocation3], %s890
        // Predicated region
        $region41: #{tpu_custom_call.1} parent=35 // pred_check
          %p892 = pneg %p167
        $region42: #{tpu_custom_call.1} parent=35 // pred_check_branch
          %894 = sbr.rel (%p892) target = $region44
        $region43: #{tpu_custom_call.1} parent=35 // pred_region
          %s895 = smul.u32 4, %s24
          %s897 = ssub.s32 1024, 1024
          %898 = vsyncadd %s888, %s897
          %s899 = smul.addr %s895, 2
          %s900 = sadd.s32 %s25, %s899
          %s901 = smul.addr %s23, 32
          %s902 = sadd.s32 %s900, %s901
          %s903 = smul.addr %s902, 128
          %s904 = scalar_lea.hbm %s4, %s903
          %s905 = sshll.u32 %s891, 4
          %s906 = int_to_ptr.vmem [resolvable:$true] %s905
          %911 = dma.vmem_to_hbm [thread:$0]  %s906, 1024, %s904, %s888, 128, 128, 8
        $region44: #{tpu_custom_call.1} parent=35 // pred_fallthru
          _
      $region36: #{tpu_custom_call.1} parent=5 // pred_fallthru
        _
      %p912 = scmp.le.s32.totalorder 2, %s13
      // Predicated region
      $region45: #{tpu_custom_call.1} parent=5 // pred_check
        %p913 = pneg %p912
      $region46: #{tpu_custom_call.1} parent=5 // pred_check_branch
        %915 = sbr.rel (%p913) target = $region48
      $region47: #{tpu_custom_call.1} parent=5 // pred_region
        %s916 = ssub.s32 %s13, 2
        // Predicated region
        $region49: #{tpu_custom_call.1} parent=47 // pred_check
          %p917 = pneg %p173
        $region50: #{tpu_custom_call.1} parent=47 // pred_check_branch
          %919 = sbr.rel (%p917) target = $region52
        $region51: #{tpu_custom_call.1} parent=47 // pred_region
          %s920 = sand.u32 %s158, 1
          %s921 = scalar_lea.sflag [#allocation4], %s920
          %s922 = sand.u32 %s158, 1
          %s923 = smul.addr %s922, 64
          %s924 = scalar_lea.vmem [#allocation3], %s923
          %925 = dma.done %s921, 1024
        $region52: #{tpu_custom_call.1} parent=47 // pred_fallthru
          _
      $region48: #{tpu_custom_call.1} parent=5 // pred_fallthru
        _
    $region6: #{tpu_custom_call.1} parent=1 // loop_footer
      %s17 = sadd.s32 1, %s13
    $region7: #{tpu_custom_call.1} parent=1 // loop_footer_branch
      %12 = sbr.rel target = $region3
    $region8: #{tpu_custom_call.1} parent=1 // loop_exit
      _
    %926 = vsyncpa [#allocation4], 1
    %s927 = scalar_lea.sflag [#allocation4], 1
    %928 = vsyncpa %s927, 1

</llo_original>
